<compile_context>
chip_gen: v7x
topology: tpu7x:2x2x1
jax: 0.10.0
libtpu: 0.0.40
codegen_flags: <defaults>
</compile_context>

<pallas_src>
import jax
import jax.numpy as jnp
from jax.experimental import pallas as pl
from jax.experimental.pallas import tpu as pltpu

# ----------------------------- small config ---------------------------------
B, S, H = 2, 8, 32          # batch, seq-len, hidden (synthetic stand-in for 768)
D1, D2 = 100, 10            # logical head dims: H->100 -> 10 -> 1
D1P, D2P = 128, 128         # lane-padded head dims used inside the kernel
VOCAB = 50
FF = 64
TB = 8                      # batch tile (kept small; pooled rows land on sublanes)
OUT_LANES = 128             # lane-dense output slab width


# ----------------------------- Pallas kernel --------------------------------
def _ranker_head_kernel(seq1_ref, seq2_ref, w1_ref, b1_ref, w2_ref, b2_ref,
                        wo_ref, bo_ref, out1_ref, out2_ref):
    """Fused ranking head, applied to both members of the input pair."""
    w1 = w1_ref[...]
    b1 = b1_ref[...]
    w2 = w2_ref[...]
    b2 = b2_ref[...]
    wo = wo_ref[...]
    bo = bo_ref[...]

    def head(seq_ref, out_ref):
        # seq_ref: (TB, S, H) bf16; accumulate in f32.
        x = seq_ref[...].astype(jnp.float32)

        # AdaptiveAvgPool1d(1) over the sequence: sublane reduction + constant
        # 1/S multiply (no per-element divide).
        inv_s = 1.0 / x.shape[1]
        pooled = jnp.sum(x, axis=1) * inv_s                    # (TB, H) f32

        # h1 = ReLU(pooled @ W1 + b1) -- full 128-lane MXU tile.
        h1 = jnp.dot(pooled, w1, preferred_element_type=jnp.float32) + b1
        h1 = jnp.maximum(h1, 0.0)                              # (TB, 128)

        # h2 = ReLU(h1 @ W2 + b2)
        h2 = jnp.dot(h1, w2, preferred_element_type=jnp.float32) + b2
        h2 = jnp.maximum(h2, 0.0)                              # (TB, 128)

        # Final Linear(10, 1) as a lane reduction (padding lanes of wo are 0).
        scores = jnp.sum(h2 * wo, axis=-1, keepdims=True) + bo  # (TB, 1)

        # Lane-dense store: broadcast across the 128-lane slab so the store is
        # an unmasked full-vreg write; the wrapper slices lane 0.
        out_ref[...] = jnp.broadcast_to(scores, out_ref.shape)

    head(seq1_ref, out1_ref)
    head(seq2_ref, out2_ref)


def ranker_head_pair(seq1, seq2, hpp):
    """Fused head for both inputs of the pair.

    seq1, seq2: (B, S, H) float32 sequence embeddings (BERT last_hidden_state,
    BEFORE PyTorch's .transpose(1,2)).  Returns (scores_1, scores_2), each
    shaped (B, 1, 1) to match the PyTorch module.
    """
    b, s, h = seq1.shape
    assert seq2.shape == (b, s, h)

    # Stream the sequence embeddings in bf16 (the cast fuses into the encoder
    # output fusion under jit); the kernel accumulates in f32.
    seq1 = seq1.astype(jnp.bfloat16)
    seq2 = seq2.astype(jnp.bfloat16)

    # Pad the batch to a multiple of the batch tile.
    b_pad = pl.cdiv(b, TB) * TB
    if b_pad != b:
        pad = ((0, b_pad - b), (0, 0), (0, 0))
        seq1 = jnp.pad(seq1, pad)
        seq2 = jnp.pad(seq2, pad)

    grid = (b_pad // TB,)

    seq_spec = pl.BlockSpec((TB, s, h), lambda i: (i, 0, 0))
    # Weights get constant index_maps -> loaded once, resident across all
    # batch-grid steps.
    w_spec = lambda shape: pl.BlockSpec(shape, lambda i: (0, 0))
    out_spec = pl.BlockSpec((TB, OUT_LANES), lambda i: (i, 0))

    out1, out2 = pl.pallas_call(
        _ranker_head_kernel,
        out_shape=(
            jax.ShapeDtypeStruct((b_pad, OUT_LANES), jnp.float32),
            jax.ShapeDtypeStruct((b_pad, OUT_LANES), jnp.float32),
        ),
        grid_spec=pltpu.PrefetchScalarGridSpec(
            num_scalar_prefetch=0,
            grid=grid,
            in_specs=[
                seq_spec,                       # seq1 tile
                seq_spec,                       # seq2 tile
                w_spec(hpp["w1"].shape),
                w_spec(hpp["b1"].shape),
                w_spec(hpp["w2"].shape),
                w_spec(hpp["b2"].shape),
                w_spec(hpp["wo"].shape),
                w_spec(hpp["bo"].shape),
            ],
            out_specs=[out_spec, out_spec],
        ),
        compiler_params=pltpu.CompilerParams(
            # Batch tiles are independent -> shard across v7x's two TCs;
            # harmless on single-TC v5e/v6e.
            dimension_semantics=("parallel",),
        ),
    )(seq1, seq2, hpp["w1"], hpp["b1"], hpp["w2"], hpp["b2"],
      hpp["wo"], hpp["bo"])

    scores_1 = out1[:b, :1].reshape(b, 1, 1)
    scores_2 = out2[:b, :1].reshape(b, 1, 1)
    return scores_1, scores_2


# ------------------- synthetic tiny "BERT" encoder (plain JAX) --------------
# TODO(synk): the pretrained 'bert-base-cased' encoder cannot be reproduced
# in-script; it is replaced by a deterministic tiny single-layer encoder.
def _layer_norm(x, eps=1e-12):
    mu = jnp.mean(x, axis=-1, keepdims=True)
    var = jnp.var(x, axis=-1, keepdims=True)
    return (x - mu) / jnp.sqrt(var + eps)


def synthetic_bert_encoder(input_ids, attention_mask, ep):
    x = ep["tok_emb"][input_ids] + ep["pos_emb"][None, :input_ids.shape[1], :]
    x = _layer_norm(x)
    q = x @ ep["wq"]
    k = x @ ep["wk"]
    v = x @ ep["wv"]
    att = jnp.einsum("bqd,bkd->bqk", q, k) / jnp.sqrt(jnp.float32(H))
    mask = attention_mask[:, None, :].astype(jnp.float32)
    att = jnp.where(mask > 0, att, -1e9)
    att = jax.nn.softmax(att, axis=-1)
    ctx = jnp.einsum("bqk,bkd->bqd", att, v) @ ep["wo_attn"]
    x = _layer_norm(x + ctx)
    ff = jax.nn.gelu(x @ ep["w_ff1"]) @ ep["w_ff2"]
    x = _layer_norm(x + ff)
    return x                                                   # (B, S, H)


# ----------------------------- full forward ---------------------------------
def bert_ranker_forward(input_ids1, attention_mask1, input_ids2, attention_mask2,
                        ep, hpp):
    seq1 = synthetic_bert_encoder(input_ids1, attention_mask1, ep)
    seq2 = synthetic_bert_encoder(input_ids2, attention_mask2, ep)
    # Both head evaluations fused into one Pallas call (shared weights).
    return ranker_head_pair(seq1, seq2, hpp)


# --------------------- deterministic parameter init -------------------------
def init_params(key):
    ks = jax.random.split(key, 12)
    sc = 0.05
    ep = {
        "tok_emb": sc * jax.random.normal(ks[0], (VOCAB, H), jnp.float32),
        "pos_emb": sc * jax.random.normal(ks[1], (S, H), jnp.float32),
        "wq": sc * jax.random.normal(ks[2], (H, H), jnp.float32),
        "wk": sc * jax.random.normal(ks[3], (H, H), jnp.float32),
        "wv": sc * jax.random.normal(ks[4], (H, H), jnp.float32),
        "wo_attn": sc * jax.random.normal(ks[5], (H, H), jnp.float32),
        "w_ff1": sc * jax.random.normal(ks[6], (H, FF), jnp.float32),
        "w_ff2": sc * jax.random.normal(ks[7], (FF, H), jnp.float32),
    }
    # Logical (unpadded) head weights, stored pre-transposed as [in, out].
    hp = {
        "w1": sc * jax.random.normal(ks[8], (H, D1), jnp.float32),
        "b1": sc * jax.random.normal(ks[9], (1, D1), jnp.float32),
        "w2": sc * jax.random.normal(ks[10], (D1, D2), jnp.float32),
        "b2": sc * jax.random.normal(ks[11], (1, D2), jnp.float32),
        "wo": sc * jnp.arange(1, D2 + 1, dtype=jnp.float32).reshape(1, D2) / D2,
        "bo": jnp.array([[0.1]], jnp.float32),
    }
    return ep, hp


def pad_head_params(hp):
    """Zero-pad the head weights to 128-lane shapes (exact through ReLU)."""
    return {
        "w1": jnp.zeros((H, D1P), jnp.float32).at[:, :D1].set(hp["w1"]),
        "b1": jnp.zeros((1, D1P), jnp.float32).at[:, :D1].set(hp["b1"]),
        "w2": jnp.zeros((D1P, D2P), jnp.float32).at[:D1, :D2].set(hp["w2"]),
        "b2": jnp.zeros((1, D2P), jnp.float32).at[:, :D2].set(hp["b2"]),
        "wo": jnp.zeros((1, D2P), jnp.float32).at[:, :D2].set(hp["wo"]),
        "bo": hp["bo"],
    }


def _head_ref(seq_emb, hp):
    """Plain-JAX reference of the Pallas head (mirrors the bf16 input cast)."""
    x = seq_emb.astype(jnp.bfloat16).astype(jnp.float32)
    pooled = jnp.mean(x, axis=1)
    h1 = jnp.maximum(pooled @ hp["w1"] + hp["b1"], 0.0)
    h2 = jnp.maximum(h1 @ hp["w2"] + hp["b2"], 0.0)
    return (jnp.sum(h2 * hp["wo"], axis=-1, keepdims=True)
            + hp["bo"]).reshape(-1, 1, 1)


if __name__ == "__main__":
    key = jax.random.PRNGKey(0)
    k_ids1, k_ids2, k_params = jax.random.split(key, 3)

    input_ids1 = jax.random.randint(k_ids1, (B, S), 0, VOCAB, dtype=jnp.int32)
    input_ids2 = jax.random.randint(k_ids2, (B, S), 0, VOCAB, dtype=jnp.int32)
    attention_mask1 = jnp.ones((B, S), jnp.int32).at[:, S - 2:].set(0)
    attention_mask2 = jnp.ones((B, S), jnp.int32)

    ep, hp = init_params(k_params)
    hpp = pad_head_params(hp)

    fwd = jax.jit(bert_ranker_forward)
    scores_1, scores_2 = fwd(input_ids1, attention_mask1,
                             input_ids2, attention_mask2, ep, hpp)
    jax.block_until_ready((scores_1, scores_2))

    # Verify the fused Pallas head against a plain-JAX reference.
    seq1 = synthetic_bert_encoder(input_ids1, attention_mask1, ep)
    seq2 = synthetic_bert_encoder(input_ids2, attention_mask2, ep)
    ref_1 = _head_ref(seq1, hp)
    ref_2 = _head_ref(seq2, hp)
    assert scores_1.shape == (B, 1, 1) and scores_2.shape == (B, 1, 1)
    assert jnp.allclose(scores_1, ref_1, atol=1e-3), (scores_1, ref_1)
    assert jnp.allclose(scores_2, ref_2, atol=1e-3), (scores_2, ref_2)

    print("KERNEL_OK")
</pallas_src>

<mosaic_0001>
module attributes {stable_mosaic.version = 11 : i64} {
  func.func @_ranker_head_kernel(%arg0: i32, %arg1: memref<8x8x32xbf16, #tpu.memory_space<vmem>>, %arg2: memref<8x8x32xbf16, #tpu.memory_space<vmem>>, %arg3: memref<32x128xf32, #tpu.memory_space<vmem>>, %arg4: memref<1x128xf32, #tpu.memory_space<vmem>>, %arg5: memref<128x128xf32, #tpu.memory_space<vmem>>, %arg6: memref<1x128xf32, #tpu.memory_space<vmem>>, %arg7: memref<1x128xf32, #tpu.memory_space<vmem>>, %arg8: memref<1x1xf32, #tpu.memory_space<vmem>>, %arg9: memref<8x128xf32, #tpu.memory_space<vmem>>, %arg10: memref<8x128xf32, #tpu.memory_space<vmem>>) attributes {dimension_semantics = [#tpu.dimension_semantics<parallel>], iteration_bounds = array<i64: 1>, scalar_prefetch = 0 : i64, scratch_operands = 0 : i64, tpu.core_type = #tpu.core_type<tc>, window_params = [{transform_indices = @transform_0, window_bounds = array<i64: 8, 8, 32>}, {transform_indices = @transform_1, window_bounds = array<i64: 8, 8, 32>}, {pipeline_mode = #tpu.pipeline_mode<synchronous>, transform_indices = @transform_2, window_bounds = array<i64: 32, 128>}, {pipeline_mode = #tpu.pipeline_mode<synchronous>, transform_indices = @transform_3, window_bounds = array<i64: 1, 128>}, {pipeline_mode = #tpu.pipeline_mode<synchronous>, transform_indices = @transform_4, window_bounds = array<i64: 128, 128>}, {pipeline_mode = #tpu.pipeline_mode<synchronous>, transform_indices = @transform_5, window_bounds = array<i64: 1, 128>}, {pipeline_mode = #tpu.pipeline_mode<synchronous>, transform_indices = @transform_6, window_bounds = array<i64: 1, 128>}, {pipeline_mode = #tpu.pipeline_mode<synchronous>, transform_indices = @transform_7, window_bounds = array<i64: 1, 1>}, {transform_indices = @transform_8, window_bounds = array<i64: 8, 128>}, {transform_indices = @transform_9, window_bounds = array<i64: 8, 128>}]} {
    %c0 = arith.constant 0 : index
    %c0_0 = arith.constant 0 : index
    %0 = vector.load %arg3[%c0, %c0_0] : memref<32x128xf32, #tpu.memory_space<vmem>>, vector<32x128xf32>
    %c0_1 = arith.constant 0 : index
    %c0_2 = arith.constant 0 : index
    %1 = vector.load %arg4[%c0_1, %c0_2] : memref<1x128xf32, #tpu.memory_space<vmem>>, vector<1x128xf32>
    %c0_3 = arith.constant 0 : index
    %c0_4 = arith.constant 0 : index
    %2 = vector.load %arg5[%c0_3, %c0_4] : memref<128x128xf32, #tpu.memory_space<vmem>>, vector<128x128xf32>
    %c0_5 = arith.constant 0 : index
    %c0_6 = arith.constant 0 : index
    %3 = vector.load %arg6[%c0_5, %c0_6] : memref<1x128xf32, #tpu.memory_space<vmem>>, vector<1x128xf32>
    %c0_7 = arith.constant 0 : index
    %c0_8 = arith.constant 0 : index
    %4 = vector.load %arg7[%c0_7, %c0_8] : memref<1x128xf32, #tpu.memory_space<vmem>>, vector<1x128xf32>
    %c0_9 = arith.constant 0 : index
    %c0_10 = arith.constant 0 : index
    %5 = vector.load %arg8[%c0_9, %c0_10] : memref<1x1xf32, #tpu.memory_space<vmem>>, vector<1x1xf32>
    %c0_11 = arith.constant 0 : index
    %c0_12 = arith.constant 0 : index
    %c0_13 = arith.constant 0 : index
    %6 = vector.load %arg1[%c0_11, %c0_12, %c0_13] : memref<8x8x32xbf16, #tpu.memory_space<vmem>>, vector<8x8x32xbf16>
    %7 = arith.extf %6 : vector<8x8x32xbf16> to vector<8x8x32xf32>
    %cst = arith.constant dense<0.000000e+00> : vector<8x32xf32>
    %8 = vector.multi_reduction <add>, %7, %cst [1] : vector<8x8x32xf32> to vector<8x32xf32>
    %cst_14 = arith.constant 1.250000e-01 : f32
    %9 = vector.broadcast %cst_14 : f32 to vector<8x32xf32>
    %10 = arith.mulf %8, %9 : vector<8x32xf32>
    %cst_15 = arith.constant dense<0.000000e+00> : vector<8x128xf32>
    %11 = tpu.matmul %10, %0, %cst_15 {dimension_numbers = #tpu.dot_dimension_numbers<[1], [0], [0], [1], [0, 0, 1, 1], [], []>} : vector<8x32xf32>, vector<32x128xf32>, vector<8x128xf32> -> vector<8x128xf32>
    %12 = vector.broadcast %1 : vector<1x128xf32> to vector<8x128xf32>
    %13 = arith.addf %11, %12 : vector<8x128xf32>
    %cst_16 = arith.constant 0.000000e+00 : f32
    %14 = vector.broadcast %cst_16 : f32 to vector<8x128xf32>
    %15 = arith.maximumf %13, %14 : vector<8x128xf32>
    %cst_17 = arith.constant dense<0.000000e+00> : vector<8x128xf32>
    %16 = tpu.matmul %15, %2, %cst_17 {dimension_numbers = #tpu.dot_dimension_numbers<[1], [0], [0], [1], [0, 0, 1, 1], [], []>} : vector<8x128xf32>, vector<128x128xf32>, vector<8x128xf32> -> vector<8x128xf32>
    %17 = vector.broadcast %3 : vector<1x128xf32> to vector<8x128xf32>
    %18 = arith.addf %16, %17 : vector<8x128xf32>
    %cst_18 = arith.constant 0.000000e+00 : f32
    %19 = vector.broadcast %cst_18 : f32 to vector<8x128xf32>
    %20 = arith.maximumf %18, %19 : vector<8x128xf32>
    %21 = vector.broadcast %4 : vector<1x128xf32> to vector<8x128xf32>
    %22 = arith.mulf %20, %21 : vector<8x128xf32>
    %cst_19 = arith.constant dense<0.000000e+00> : vector<8xf32>
    %23 = vector.multi_reduction <add>, %22, %cst_19 [1] : vector<8x128xf32> to vector<8xf32>
    %24 = vector.shape_cast %23 : vector<8xf32> to vector<8x1xf32>
    %25 = vector.broadcast %5 : vector<1x1xf32> to vector<8x1xf32>
    %26 = arith.addf %24, %25 : vector<8x1xf32>
    %27 = vector.shape_cast %26 : vector<8x1xf32> to vector<8x1xf32>
    %28 = vector.broadcast %27 : vector<8x1xf32> to vector<8x128xf32>
    %c0_20 = arith.constant 0 : index
    %c0_21 = arith.constant 0 : index
    %29 = vector.load %arg9[%c0_20, %c0_21] : memref<8x128xf32, #tpu.memory_space<vmem>>, vector<8x128xf32>
    tpu.vector_store %arg9[%c0_20, %c0_21], %28 {strides = array<i32>} : memref<8x128xf32, #tpu.memory_space<vmem>>, vector<8x128xf32>,
    %c0_22 = arith.constant 0 : index
    %c0_23 = arith.constant 0 : index
    %c0_24 = arith.constant 0 : index
    %30 = vector.load %arg2[%c0_22, %c0_23, %c0_24] : memref<8x8x32xbf16, #tpu.memory_space<vmem>>, vector<8x8x32xbf16>
    %31 = arith.extf %30 : vector<8x8x32xbf16> to vector<8x8x32xf32>
    %cst_25 = arith.constant dense<0.000000e+00> : vector<8x32xf32>
    %32 = vector.multi_reduction <add>, %31, %cst_25 [1] : vector<8x8x32xf32> to vector<8x32xf32>
    %cst_26 = arith.constant 1.250000e-01 : f32
    %33 = vector.broadcast %cst_26 : f32 to vector<8x32xf32>
    %34 = arith.mulf %32, %33 : vector<8x32xf32>
    %cst_27 = arith.constant dense<0.000000e+00> : vector<8x128xf32>
    %35 = tpu.matmul %34, %0, %cst_27 {dimension_numbers = #tpu.dot_dimension_numbers<[1], [0], [0], [1], [0, 0, 1, 1], [], []>} : vector<8x32xf32>, vector<32x128xf32>, vector<8x128xf32> -> vector<8x128xf32>
    %36 = vector.broadcast %1 : vector<1x128xf32> to vector<8x128xf32>
    %37 = arith.addf %35, %36 : vector<8x128xf32>
    %cst_28 = arith.constant 0.000000e+00 : f32
    %38 = vector.broadcast %cst_28 : f32 to vector<8x128xf32>
    %39 = arith.maximumf %37, %38 : vector<8x128xf32>
    %cst_29 = arith.constant dense<0.000000e+00> : vector<8x128xf32>
    %40 = tpu.matmul %39, %2, %cst_29 {dimension_numbers = #tpu.dot_dimension_numbers<[1], [0], [0], [1], [0, 0, 1, 1], [], []>} : vector<8x128xf32>, vector<128x128xf32>, vector<8x128xf32> -> vector<8x128xf32>
    %41 = vector.broadcast %3 : vector<1x128xf32> to vector<8x128xf32>
    %42 = arith.addf %40, %41 : vector<8x128xf32>
    %cst_30 = arith.constant 0.000000e+00 : f32
    %43 = vector.broadcast %cst_30 : f32 to vector<8x128xf32>
    %44 = arith.maximumf %42, %43 : vector<8x128xf32>
    %45 = vector.broadcast %4 : vector<1x128xf32> to vector<8x128xf32>
    %46 = arith.mulf %44, %45 : vector<8x128xf32>
    %cst_31 = arith.constant dense<0.000000e+00> : vector<8xf32>
    %47 = vector.multi_reduction <add>, %46, %cst_31 [1] : vector<8x128xf32> to vector<8xf32>
    %48 = vector.shape_cast %47 : vector<8xf32> to vector<8x1xf32>
    %49 = vector.broadcast %5 : vector<1x1xf32> to vector<8x1xf32>
    %50 = arith.addf %48, %49 : vector<8x1xf32>
    %51 = vector.shape_cast %50 : vector<8x1xf32> to vector<8x1xf32>
    %52 = vector.broadcast %51 : vector<8x1xf32> to vector<8x128xf32>
    %c0_32 = arith.constant 0 : index
    %c0_33 = arith.constant 0 : index
    %53 = vector.load %arg10[%c0_32, %c0_33] : memref<8x128xf32, #tpu.memory_space<vmem>>, vector<8x128xf32>
    tpu.vector_store %arg10[%c0_32, %c0_33], %52 {strides = array<i32>} : memref<8x128xf32, #tpu.memory_space<vmem>>, vector<8x128xf32>,
    return
  }
  func.func @transform_0(%arg0: i32) -> (i32, i32, i32) {
    %c0_i32 = arith.constant 0 : i32
    %c0_i32_0 = arith.constant 0 : i32
    %c0_i32_1 = arith.constant 0 : i32
    return %arg0, %c0_i32, %c0_i32_0 : i32, i32, i32
  }
  func.func @transform_1(%arg0: i32) -> (i32, i32, i32) {
    %c0_i32 = arith.constant 0 : i32
    %c0_i32_0 = arith.constant 0 : i32
    %c0_i32_1 = arith.constant 0 : i32
    return %arg0, %c0_i32, %c0_i32_0 : i32, i32, i32
  }
  func.func @transform_2(%arg0: i32) -> (i32, i32) {
    %c0_i32 = arith.constant 0 : i32
    %c0_i32_0 = arith.constant 0 : i32
    %c0_i32_1 = arith.constant 0 : i32
    return %c0_i32, %c0_i32_0 : i32, i32
  }
  func.func @transform_3(%arg0: i32) -> (i32, i32) {
    %c0_i32 = arith.constant 0 : i32
    %c0_i32_0 = arith.constant 0 : i32
    %c0_i32_1 = arith.constant 0 : i32
    return %c0_i32, %c0_i32_0 : i32, i32
  }
  func.func @transform_4(%arg0: i32) -> (i32, i32) {
    %c0_i32 = arith.constant 0 : i32
    %c0_i32_0 = arith.constant 0 : i32
    %c0_i32_1 = arith.constant 0 : i32
    return %c0_i32, %c0_i32_0 : i32, i32
  }
  func.func @transform_5(%arg0: i32) -> (i32, i32) {
    %c0_i32 = arith.constant 0 : i32
    %c0_i32_0 = arith.constant 0 : i32
    %c0_i32_1 = arith.constant 0 : i32
    return %c0_i32, %c0_i32_0 : i32, i32
  }
  func.func @transform_6(%arg0: i32) -> (i32, i32) {
    %c0_i32 = arith.constant 0 : i32
    %c0_i32_0 = arith.constant 0 : i32
    %c0_i32_1 = arith.constant 0 : i32
    return %c0_i32, %c0_i32_0 : i32, i32
  }
  func.func @transform_7(%arg0: i32) -> (i32, i32) {
    %c0_i32 = arith.constant 0 : i32
    %c0_i32_0 = arith.constant 0 : i32
    %c0_i32_1 = arith.constant 0 : i32
    return %c0_i32, %c0_i32_0 : i32, i32
  }
  func.func @transform_8(%arg0: i32) -> (i32, i32) {
    %c0_i32 = arith.constant 0 : i32
    %c0_i32_0 = arith.constant 0 : i32
    return %arg0, %c0_i32 : i32, i32
  }
  func.func @transform_9(%arg0: i32) -> (i32, i32) {
    %c0_i32 = arith.constant 0 : i32
    %c0_i32_0 = arith.constant 0 : i32
    return %arg0, %c0_i32 : i32, i32
  }
}

</mosaic_0001>

<llo_original>
// kernel: bert_ranker_forward.1
$region0: #{bert_ranker_forward.1}
  #allocation0 [shape = 'u32[]', space=smem, size = 0x4, offset = 0x4, fixed_abs, tag = 'smem constant byte address 0x4 - core index']
  #allocation1 [shape = 'u32[144,128]{1,0:T(1,128)}', space=vmem, size = 0x12000, scoped, tag = 'internal scratch']
  #allocation2 [shape = 'f32[1,1]{1,0:T(1,128)S(1)}', space=vmem, size = 0x200, scoped, tag = 'scoped memory for bert_ranker_forward.1']
  %s0 = inlined_call_operand.vmem [shape: bf16[8,8,32], index: 0, kind: input, shape index: {}]
  %s1 = inlined_call_operand.vmem [shape: bf16[8,8,32], index: 1, kind: input, shape index: {}]
  %s2 = inlined_call_operand.vmem [shape: f32[32,128], index: 2, kind: input, shape index: {}]
  %s3 = inlined_call_operand.vmem [shape: f32[1,128], index: 3, kind: input, shape index: {}]
  %s4 = inlined_call_operand.vmem [shape: f32[128,128], index: 4, kind: input, shape index: {}]
  %s5 = inlined_call_operand.vmem [shape: f32[1,128], index: 5, kind: input, shape index: {}]
  %s6 = inlined_call_operand.vmem [shape: f32[1,128], index: 6, kind: input, shape index: {}]
  %s7 = inlined_call_operand.<no memory space> [shape: f32[1,1], index: 7, kind: input, shape index: {}]
  %s8 = inlined_call_operand.vmem [shape: f32[8,128], index: 8, kind: output, shape index: {0}]
  %s9 = inlined_call_operand.vmem [shape: f32[8,128], index: 9, kind: output, shape index: {1}]
  %10 = xla_tuple %s8, %s9
  %s11 = sld [smem:[#allocation0]]
  $region50: #{bert_ranker_forward.1} parent=0
    _
  %s13 = ssub.s32 1, %s11
  %s14 = scalar_select 0, %s13, %s11
  %v15 = vstv %s7
  %16 = vst [vmem:[#allocation2] sm:$0x1] %v15
  // Predicated region
  $region2: #{bert_ranker_forward.1} parent=0 // pred_check
    _
  $region3: #{bert_ranker_forward.1} parent=0 // pred_check_branch
    %18 = sbr.rel (0) target = $region5
  $region4: #{bert_ranker_forward.1} parent=0 // pred_region
    _
  $region5: #{bert_ranker_forward.1} parent=0 // pred_fallthru
    _
  // Predicated region
  $region6: #{bert_ranker_forward.1} parent=0 // pred_check
    _
  $region7: #{bert_ranker_forward.1} parent=0 // pred_check_branch
    %20 = sbr.rel (0) target = $region9
  $region8: #{bert_ranker_forward.1} parent=0 // pred_region
    _
  $region9: #{bert_ranker_forward.1} parent=0 // pred_fallthru
    _
  // Predicated region
  $region10: #{bert_ranker_forward.1} parent=0 // pred_check
    _
  $region11: #{bert_ranker_forward.1} parent=0 // pred_check_branch
    %22 = sbr.rel (0) target = $region13
  $region12: #{bert_ranker_forward.1} parent=0 // pred_region
    _
  $region13: #{bert_ranker_forward.1} parent=0 // pred_fallthru
    _
  // Predicated region
  $region14: #{bert_ranker_forward.1} parent=0 // pred_check
    _
  $region15: #{bert_ranker_forward.1} parent=0 // pred_check_branch
    %24 = sbr.rel (0) target = $region17
  $region16: #{bert_ranker_forward.1} parent=0 // pred_region
    _
  $region17: #{bert_ranker_forward.1} parent=0 // pred_fallthru
    _
  // Predicated region
  $region18: #{bert_ranker_forward.1} parent=0 // pred_check
    _
  $region19: #{bert_ranker_forward.1} parent=0 // pred_check_branch
    %26 = sbr.rel (0) target = $region21
  $region20: #{bert_ranker_forward.1} parent=0 // pred_region
    _
  $region21: #{bert_ranker_forward.1} parent=0 // pred_fallthru
    _
  // Predicated region
  $region22: #{bert_ranker_forward.1} parent=0 // pred_check
    _
  $region23: #{bert_ranker_forward.1} parent=0 // pred_check_branch
    %28 = sbr.rel (0) target = $region25
  $region24: #{bert_ranker_forward.1} parent=0 // pred_region
    _
  $region25: #{bert_ranker_forward.1} parent=0 // pred_fallthru
    _
  // Predicated region
  $region26: #{bert_ranker_forward.1} parent=0 // pred_check
    _
  $region27: #{bert_ranker_forward.1} parent=0 // pred_check_branch
    %30 = sbr.rel (0) target = $region29
  $region28: #{bert_ranker_forward.1} parent=0 // pred_region
    _
  $region29: #{bert_ranker_forward.1} parent=0 // pred_fallthru
    _
  // Predicated region
  $region30: #{bert_ranker_forward.1} parent=0 // pred_check
    _
  $region31: #{bert_ranker_forward.1} parent=0 // pred_check_branch
    %32 = sbr.rel (0) target = $region33
  $region32: #{bert_ranker_forward.1} parent=0 // pred_region
    _
  $region33: #{bert_ranker_forward.1} parent=0 // pred_fallthru
    _
  %v33 = vld [vmem:[%s2] sm:$0xff]
  %v34 = vld [vmem:[%s2 + $0x8] sm:$0xff]
  %v35 = vld [vmem:[%s2 + $0x10] sm:$0xff]
  %v36 = vld [vmem:[%s2 + $0x18] sm:$0xff]
  %v37 = vld [vmem:[%s3] sm:$0x1]
  %v38 = vld [vmem:[%s4] sm:$0xff]
  %v39 = vld [vmem:[%s4 + $0x8] sm:$0xff]
  %v40 = vld [vmem:[%s4 + $0x10] sm:$0xff]
  %v41 = vld [vmem:[%s4 + $0x18] sm:$0xff]
  %v42 = vld [vmem:[%s4 + $0x20] sm:$0xff]
  %v43 = vld [vmem:[%s4 + $0x28] sm:$0xff]
  %v44 = vld [vmem:[%s4 + $0x30] sm:$0xff]
  %v45 = vld [vmem:[%s4 + $0x38] sm:$0xff]
  %v46 = vld [vmem:[%s4 + $0x40] sm:$0xff]
  %v47 = vld [vmem:[%s4 + $0x48] sm:$0xff]
  %v48 = vld [vmem:[%s4 + $0x50] sm:$0xff]
  %v49 = vld [vmem:[%s4 + $0x58] sm:$0xff]
  %v50 = vld [vmem:[%s4 + $0x60] sm:$0xff]
  %v51 = vld [vmem:[%s4 + $0x68] sm:$0xff]
  %v52 = vld [vmem:[%s4 + $0x70] sm:$0xff]
  %v53 = vld [vmem:[%s4 + $0x78] sm:$0xff]
  %v54 = vld [vmem:[%s5] sm:$0x1]
  %v55 = vld [vmem:[%s6] sm:$0x1]
  %v56 = vld [vmem:[#allocation2] sm:$0x1]
  %v57 = vld [vmem:[%s0] sm:$0xf]
  %v58 = vld [vmem:[%s0 + $0x4] sm:$0xf]
  %v59 = vld [vmem:[%s0 + $0x8] sm:$0xf]
  %v60 = vld [vmem:[%s0 + $0xc] sm:$0xf]
  %v61 = vld [vmem:[%s0 + $0x10] sm:$0xf]
  %v62 = vld [vmem:[%s0 + $0x14] sm:$0xf]
  %v63 = vld [vmem:[%s0 + $0x18] sm:$0xf]
  %v64 = vld [vmem:[%s0 + $0x1c] sm:$0xf]
  %v65 = vunpack.c.l.bf16 %v57
  %v66 = vunpack.c.l.bf16 %v58
  %v67 = vunpack.c.l.bf16 %v59
  %v68 = vunpack.c.l.bf16 %v60
  %v69 = vunpack.c.l.bf16 %v61
  %v70 = vunpack.c.l.bf16 %v62
  %v71 = vunpack.c.l.bf16 %v63
  %v72 = vunpack.c.l.bf16 %v64
  %vm73 = vcmask 261120
  %v74 = vsel %vm73, %v65, 0.0
  %v75 = vrot.slane %v74, 4
  %v76 = vadd.f32 %v74, %v75
  %v77 = vrot.slane %v76, 2
  %v78 = vadd.f32 %v76, %v77
  %v79 = vrot.slane %v78, 1
  %v80 = vadd.f32 %v78, %v79
  %v81 = vsel %vm73, %v66, 0.0
  %v82 = vrot.slane %v81, 4
  %v83 = vadd.f32 %v81, %v82
  %v84 = vrot.slane %v83, 2
  %v85 = vadd.f32 %v83, %v84
  %v86 = vrot.slane %v85, 1
  %v87 = vadd.f32 %v85, %v86
  %v88 = vsel %vm73, %v67, 0.0
  %v89 = vrot.slane %v88, 4
  %v90 = vadd.f32 %v88, %v89
  %v91 = vrot.slane %v90, 2
  %v92 = vadd.f32 %v90, %v91
  %v93 = vrot.slane %v92, 1
  %v94 = vadd.f32 %v92, %v93
  %v95 = vsel %vm73, %v68, 0.0
  %v96 = vrot.slane %v95, 4
  %v97 = vadd.f32 %v95, %v96
  %v98 = vrot.slane %v97, 2
  %v99 = vadd.f32 %v97, %v98
  %v100 = vrot.slane %v99, 1
  %v101 = vadd.f32 %v99, %v100
  %v102 = vsel %vm73, %v69, 0.0
  %v103 = vrot.slane %v102, 4
  %v104 = vadd.f32 %v102, %v103
  %v105 = vrot.slane %v104, 2
  %v106 = vadd.f32 %v104, %v105
  %v107 = vrot.slane %v106, 1
  %v108 = vadd.f32 %v106, %v107
  %v109 = vsel %vm73, %v70, 0.0
  %v110 = vrot.slane %v109, 4
  %v111 = vadd.f32 %v109, %v110
  %v112 = vrot.slane %v111, 2
  %v113 = vadd.f32 %v111, %v112
  %v114 = vrot.slane %v113, 1
  %v115 = vadd.f32 %v113, %v114
  %v116 = vsel %vm73, %v71, 0.0
  %v117 = vrot.slane %v116, 4
  %v118 = vadd.f32 %v116, %v117
  %v119 = vrot.slane %v118, 2
  %v120 = vadd.f32 %v118, %v119
  %v121 = vrot.slane %v120, 1
  %v122 = vadd.f32 %v120, %v121
  %v123 = vsel %vm73, %v72, 0.0
  %v124 = vrot.slane %v123, 4
  %v125 = vadd.f32 %v123, %v124
  %v126 = vrot.slane %v125, 2
  %v127 = vadd.f32 %v125, %v126
  %v128 = vrot.slane %v127, 1
  %v129 = vadd.f32 %v127, %v128
  %v130 = vmul.f32 %v80, 0.125
  %v131 = vmul.f32 %v87, 0.125
  %v132 = vmul.f32 %v94, 0.125
  %v133 = vmul.f32 %v101, 0.125
  %v134 = vmul.f32 %v108, 0.125
  %v135 = vmul.f32 %v115, 0.125
  %v136 = vmul.f32 %v122, 0.125
  %v137 = vmul.f32 %v129, 0.125
  %v139 = vlaneseq
  %v140 = vshrl.u32 %v139, 7
  %v141 = vsub.s32 0, %v140
  %v142 = vrot.slane %v37, %v141
  %vm152 = vcmask 1041409
  %v153 = vsel %vm152, %v131, %v130
  %vm154 = vcmask 1042434
  %v155 = vsel %vm154, %v132, %v153
  %vm156 = vcmask 1043459
  %v157 = vsel %vm156, %v133, %v155
  %vm158 = vcmask 1044484
  %v159 = vsel %vm158, %v134, %v157
  %vm160 = vcmask 1045509
  %v161 = vsel %vm160, %v135, %v159
  %vm162 = vcmask 1046534
  %v163 = vsel %vm162, %v136, %v161
  %vm164 = vcmask 1047559
  %v165 = vsel %vm164, %v137, %v163
  %v166 = vsel %vm73, %v165, 0
  %168 = vmatprep.subr.mxu0 0.0
  %169 = vmatpush1.msra.mxu0 %v33
  %170 = vmatprep.subr.mxu0 0.0
  %171 = vmatpush1.msra.mxu0 %v34
  %172 = vmatprep.subr.mxu0 0.0
  %173 = vmatpush1.msra.mxu0 %v35
  %174 = vmatprep.subr.mxu0 0.0
  %175 = vmatpush1.msra.mxu0 %v36
  %176 = vmatprep.subr.mxu0 0.0
  %177 = vmatpush1.msra.mxu0 0.0
  %178 = vmatprep.subr.mxu0 0.0
  %179 = vmatpush1.msra.mxu0 0.0
  %180 = vmatprep.subr.mxu0 0.0
  %181 = vmatpush1.msra.mxu0 0.0
  %182 = vmatprep.subr.mxu0 0.0
  %183 = vmatpush1.msra.mxu0 0.0
  %184 = vmatprep.subr.mxu0 0.0
  %185 = vmatpush1.msra.mxu0 0.0
  %186 = vmatprep.subr.mxu0 0.0
  %187 = vmatpush1.msra.mxu0 0.0
  %188 = vmatprep.subr.mxu0 0.0
  %189 = vmatpush1.msra.mxu0 0.0
  %190 = vmatprep.subr.mxu0 0.0
  %191 = vmatpush1.msra.mxu0 0.0
  %192 = vmatprep.subr.mxu0 0.0
  %193 = vmatpush1.msra.mxu0 0.0
  %194 = vmatprep.subr.mxu0 0.0
  %195 = vmatpush1.msra.mxu0 0.0
  %196 = vmatprep.subr.mxu0 0.0
  %197 = vmatpush1.msra.mxu0 0.0
  %198 = vmatprep.subr.mxu0 0.0
  %199 = vmatpush1.msra.mxu0 0.0
  %200 = vmatprep.subr.mxu0 0.0
  %201 = vmatpush1.msra.mxu0 0.0
  %202 = vmatprep.subr.mxu0 0.0
  %203 = vmatpush1.msra.mxu0 0.0
  %204 = vmatprep.subr.mxu0 0.0
  %205 = vmatpush1.msra.mxu0 0.0
  %206 = vmatprep.subr.mxu0 0.0
  %207 = vmatpush1.msra.mxu0 0.0
  %208 = vmatprep.subr.mxu0 0.0
  %209 = vmatpush1.msra.mxu0 0.0
  %210 = vmatprep.subr.mxu0 0.0
  %211 = vmatpush1.msra.mxu0 0.0
  %212 = vmatprep.subr.mxu0 0.0
  %213 = vmatpush1.msra.mxu0 0.0
  %214 = vmatprep.subr.mxu0 0.0
  %215 = vmatpush1.msra.mxu0 0.0
  %216 = vmatprep.subr.mxu0 0.0
  %217 = vmatpush1.msra.mxu0 0.0
  %218 = vmatprep.subr.mxu0 0.0
  %219 = vmatpush1.msra.mxu0 0.0
  %220 = vmatprep.subr.mxu0 0.0
  %221 = vmatpush1.msra.mxu0 0.0
  %222 = vmatprep.subr.mxu0 0.0
  %223 = vmatpush1.msra.mxu0 0.0
  %224 = vmatprep.subr.mxu0 0.0
  %225 = vmatpush1.msra.mxu0 0.0
  %226 = vmatprep.subr.mxu0 0.0
  %227 = vmatpush1.msra.mxu0 0.0
  %228 = vmatprep.subr.mxu0 0.0
  %229 = vmatpush1.msra.mxu0 0.0
  %230 = vmatprep.subr.mxu0 0.0
  %231 = vmatpush1.msra.mxu0 0.0
  %232 = vmatprep.mubr.f32.mxu0 0.0
  %233 = vmatmul.mubr.f32.gmra.mrb[0].mxu0 %v166
  %v234 = vpop.f32.mrb[0].mxu0
  %v235 = vadd.f32 %v142, %v234
  %v236 = vpop.f32.mrb[0].mxu0
  %237 = vdwg.mxu0
  %v238 = vmax.f32 %v235, 0.0
  %v240 = vlaneseq
  %v241 = vshrl.u32 %v240, 7
  %v242 = vsub.s32 0, %v241
  %v243 = vrot.slane %v54, %v242
  %245 = vmatprep.subr.mxu0 0.0
  %246 = vmatpush1.msra.mxu0 %v38
  %247 = vmatprep.subr.mxu0 0.0
  %248 = vmatpush1.msra.mxu0 %v39
  %249 = vmatprep.subr.mxu0 0.0
  %250 = vmatpush1.msra.mxu0 %v40
  %251 = vmatprep.subr.mxu0 0.0
  %252 = vmatpush1.msra.mxu0 %v41
  %253 = vmatprep.subr.mxu0 0.0
  %254 = vmatpush1.msra.mxu0 %v42
  %255 = vmatprep.subr.mxu0 0.0
  %256 = vmatpush1.msra.mxu0 %v43
  %257 = vmatprep.subr.mxu0 0.0
  %258 = vmatpush1.msra.mxu0 %v44
  %259 = vmatprep.subr.mxu0 0.0
  %260 = vmatpush1.msra.mxu0 %v45
  %261 = vmatprep.subr.mxu0 0.0
  %262 = vmatpush1.msra.mxu0 %v46
  %263 = vmatprep.subr.mxu0 0.0
  %264 = vmatpush1.msra.mxu0 %v47
  %265 = vmatprep.subr.mxu0 0.0
  %266 = vmatpush1.msra.mxu0 %v48
  %267 = vmatprep.subr.mxu0 0.0
  %268 = vmatpush1.msra.mxu0 %v49
  %269 = vmatprep.subr.mxu0 0.0
  %270 = vmatpush1.msra.mxu0 %v50
  %271 = vmatprep.subr.mxu0 0.0
  %272 = vmatpush1.msra.mxu0 %v51
  %273 = vmatprep.subr.mxu0 0.0
  %274 = vmatpush1.msra.mxu0 %v52
  %275 = vmatprep.subr.mxu0 0.0
  %276 = vmatpush1.msra.mxu0 %v53
  %277 = vmatprep.subr.mxu0 0.0
  %278 = vmatpush1.msra.mxu0 0.0
  %279 = vmatprep.subr.mxu0 0.0
  %280 = vmatpush1.msra.mxu0 0.0
  %281 = vmatprep.subr.mxu0 0.0
  %282 = vmatpush1.msra.mxu0 0.0
  %283 = vmatprep.subr.mxu0 0.0
  %284 = vmatpush1.msra.mxu0 0.0
  %285 = vmatprep.subr.mxu0 0.0
  %286 = vmatpush1.msra.mxu0 0.0
  %287 = vmatprep.subr.mxu0 0.0
  %288 = vmatpush1.msra.mxu0 0.0
  %289 = vmatprep.subr.mxu0 0.0
  %290 = vmatpush1.msra.mxu0 0.0
  %291 = vmatprep.subr.mxu0 0.0
  %292 = vmatpush1.msra.mxu0 0.0
  %293 = vmatprep.subr.mxu0 0.0
  %294 = vmatpush1.msra.mxu0 0.0
  %295 = vmatprep.subr.mxu0 0.0
  %296 = vmatpush1.msra.mxu0 0.0
  %297 = vmatprep.subr.mxu0 0.0
  %298 = vmatpush1.msra.mxu0 0.0
  %299 = vmatprep.subr.mxu0 0.0
  %300 = vmatpush1.msra.mxu0 0.0
  %301 = vmatprep.subr.mxu0 0.0
  %302 = vmatpush1.msra.mxu0 0.0
  %303 = vmatprep.subr.mxu0 0.0
  %304 = vmatpush1.msra.mxu0 0.0
  %305 = vmatprep.subr.mxu0 0.0
  %306 = vmatpush1.msra.mxu0 0.0
  %307 = vmatprep.subr.mxu0 0.0
  %308 = vmatpush1.msra.mxu0 0.0
  %309 = vmatprep.mubr.f32.mxu0 0.0
  %310 = vmatmul.mubr.f32.gmra.mrb[0].mxu0 %v238
  %v311 = vpop.f32.mrb[0].mxu0
  %v312 = vadd.f32 %v243, %v311
  %v313 = vpop.f32.mrb[0].mxu0
  %314 = vdwg.mxu0
  %v315 = vmax.f32 %v312, 0.0
  %v317 = vlaneseq
  %v318 = vshrl.u32 %v317, 7
  %v319 = vsub.s32 0, %v318
  %v320 = vrot.slane %v55, %v319
  %v322 = vmul.f32 %v315, %v320
  %323 = vadd.xlane.f32.xlu0 %v322
  %v324 = vpop.xlane.xlu0 %323
  %v326 = vlaneseq
  %v327 = vshrl.u32 %v326, 7
  %v328 = vsub.s32 0, %v327
  %v329 = vrot.slane %v56, %v328
  %v331 = vadd.f32 %v324, %v329
  %333 = vset.pattern.permute.xlu0 0
  %334 = vperm.xlu0 %333, %v331
  %v335 = vpop.permute.xlu0 %334
  %337 = vst [vmem:[%s8] sm:$0xff] %v335
  %v338 = vld [vmem:[%s1] sm:$0xf]
  %v339 = vld [vmem:[%s1 + $0x4] sm:$0xf]
  %v340 = vld [vmem:[%s1 + $0x8] sm:$0xf]
  %v341 = vld [vmem:[%s1 + $0xc] sm:$0xf]
  %v342 = vld [vmem:[%s1 + $0x10] sm:$0xf]
  %v343 = vld [vmem:[%s1 + $0x14] sm:$0xf]
  %v344 = vld [vmem:[%s1 + $0x18] sm:$0xf]
  %v345 = vld [vmem:[%s1 + $0x1c] sm:$0xf]
  %v346 = vunpack.c.l.bf16 %v338
  %v347 = vunpack.c.l.bf16 %v339
  %v348 = vunpack.c.l.bf16 %v340
  %v349 = vunpack.c.l.bf16 %v341
  %v350 = vunpack.c.l.bf16 %v342
  %v351 = vunpack.c.l.bf16 %v343
  %v352 = vunpack.c.l.bf16 %v344
  %v353 = vunpack.c.l.bf16 %v345
  %v354 = vsel %vm73, %v346, 0.0
  %v355 = vrot.slane %v354, 4
  %v356 = vadd.f32 %v354, %v355
  %v357 = vrot.slane %v356, 2
  %v358 = vadd.f32 %v356, %v357
  %v359 = vrot.slane %v358, 1
  %v360 = vadd.f32 %v358, %v359
  %v361 = vsel %vm73, %v347, 0.0
  %v362 = vrot.slane %v361, 4
  %v363 = vadd.f32 %v361, %v362
  %v364 = vrot.slane %v363, 2
  %v365 = vadd.f32 %v363, %v364
  %v366 = vrot.slane %v365, 1
  %v367 = vadd.f32 %v365, %v366
  %v368 = vsel %vm73, %v348, 0.0
  %v369 = vrot.slane %v368, 4
  %v370 = vadd.f32 %v368, %v369
  %v371 = vrot.slane %v370, 2
  %v372 = vadd.f32 %v370, %v371
  %v373 = vrot.slane %v372, 1
  %v374 = vadd.f32 %v372, %v373
  %v375 = vsel %vm73, %v349, 0.0
  %v376 = vrot.slane %v375, 4
  %v377 = vadd.f32 %v375, %v376
  %v378 = vrot.slane %v377, 2
  %v379 = vadd.f32 %v377, %v378
  %v380 = vrot.slane %v379, 1
  %v381 = vadd.f32 %v379, %v380
  %v382 = vsel %vm73, %v350, 0.0
  %v383 = vrot.slane %v382, 4
  %v384 = vadd.f32 %v382, %v383
  %v385 = vrot.slane %v384, 2
  %v386 = vadd.f32 %v384, %v385
  %v387 = vrot.slane %v386, 1
  %v388 = vadd.f32 %v386, %v387
  %v389 = vsel %vm73, %v351, 0.0
  %v390 = vrot.slane %v389, 4
  %v391 = vadd.f32 %v389, %v390
  %v392 = vrot.slane %v391, 2
  %v393 = vadd.f32 %v391, %v392
  %v394 = vrot.slane %v393, 1
  %v395 = vadd.f32 %v393, %v394
  %v396 = vsel %vm73, %v352, 0.0
  %v397 = vrot.slane %v396, 4
  %v398 = vadd.f32 %v396, %v397
  %v399 = vrot.slane %v398, 2
  %v400 = vadd.f32 %v398, %v399
  %v401 = vrot.slane %v400, 1
  %v402 = vadd.f32 %v400, %v401
  %v403 = vsel %vm73, %v353, 0.0
  %v404 = vrot.slane %v403, 4
  %v405 = vadd.f32 %v403, %v404
  %v406 = vrot.slane %v405, 2
  %v407 = vadd.f32 %v405, %v406
  %v408 = vrot.slane %v407, 1
  %v409 = vadd.f32 %v407, %v408
  %v410 = vmul.f32 %v360, 0.125
  %v411 = vmul.f32 %v367, 0.125
  %v412 = vmul.f32 %v374, 0.125
  %v413 = vmul.f32 %v381, 0.125
  %v414 = vmul.f32 %v388, 0.125
  %v415 = vmul.f32 %v395, 0.125
  %v416 = vmul.f32 %v402, 0.125
  %v417 = vmul.f32 %v409, 0.125
  %v426 = vsel %vm152, %v411, %v410
  %v427 = vsel %vm154, %v412, %v426
  %v428 = vsel %vm156, %v413, %v427
  %v429 = vsel %vm158, %v414, %v428
  %v430 = vsel %vm160, %v415, %v429
  %v431 = vsel %vm162, %v416, %v430
  %v432 = vsel %vm164, %v417, %v431
  %v433 = vsel %vm73, %v432, 0
  %435 = vmatprep.subr.mxu0 0.0
  %436 = vmatpush1.msra.mxu0 %v33
  %437 = vmatprep.subr.mxu0 0.0
  %438 = vmatpush1.msra.mxu0 %v34
  %439 = vmatprep.subr.mxu0 0.0
  %440 = vmatpush1.msra.mxu0 %v35
  %441 = vmatprep.subr.mxu0 0.0
  %442 = vmatpush1.msra.mxu0 %v36
  %443 = vmatprep.subr.mxu0 0.0
  %444 = vmatpush1.msra.mxu0 0.0
  %445 = vmatprep.subr.mxu0 0.0
  %446 = vmatpush1.msra.mxu0 0.0
  %447 = vmatprep.subr.mxu0 0.0
  %448 = vmatpush1.msra.mxu0 0.0
  %449 = vmatprep.subr.mxu0 0.0
  %450 = vmatpush1.msra.mxu0 0.0
  %451 = vmatprep.subr.mxu0 0.0
  %452 = vmatpush1.msra.mxu0 0.0
  %453 = vmatprep.subr.mxu0 0.0
  %454 = vmatpush1.msra.mxu0 0.0
  %455 = vmatprep.subr.mxu0 0.0
  %456 = vmatpush1.msra.mxu0 0.0
  %457 = vmatprep.subr.mxu0 0.0
  %458 = vmatpush1.msra.mxu0 0.0
  %459 = vmatprep.subr.mxu0 0.0
  %460 = vmatpush1.msra.mxu0 0.0
  %461 = vmatprep.subr.mxu0 0.0
  %462 = vmatpush1.msra.mxu0 0.0
  %463 = vmatprep.subr.mxu0 0.0
  %464 = vmatpush1.msra.mxu0 0.0
  %465 = vmatprep.subr.mxu0 0.0
  %466 = vmatpush1.msra.mxu0 0.0
  %467 = vmatprep.subr.mxu0 0.0
  %468 = vmatpush1.msra.mxu0 0.0
  %469 = vmatprep.subr.mxu0 0.0
  %470 = vmatpush1.msra.mxu0 0.0
  %471 = vmatprep.subr.mxu0 0.0
  %472 = vmatpush1.msra.mxu0 0.0
  %473 = vmatprep.subr.mxu0 0.0
  %474 = vmatpush1.msra.mxu0 0.0
  %475 = vmatprep.subr.mxu0 0.0
  %476 = vmatpush1.msra.mxu0 0.0
  %477 = vmatprep.subr.mxu0 0.0
  %478 = vmatpush1.msra.mxu0 0.0
  %479 = vmatprep.subr.mxu0 0.0
  %480 = vmatpush1.msra.mxu0 0.0
  %481 = vmatprep.subr.mxu0 0.0
  %482 = vmatpush1.msra.mxu0 0.0
  %483 = vmatprep.subr.mxu0 0.0
  %484 = vmatpush1.msra.mxu0 0.0
  %485 = vmatprep.subr.mxu0 0.0
  %486 = vmatpush1.msra.mxu0 0.0
  %487 = vmatprep.subr.mxu0 0.0
  %488 = vmatpush1.msra.mxu0 0.0
  %489 = vmatprep.subr.mxu0 0.0
  %490 = vmatpush1.msra.mxu0 0.0
  %491 = vmatprep.subr.mxu0 0.0
  %492 = vmatpush1.msra.mxu0 0.0
  %493 = vmatprep.subr.mxu0 0.0
  %494 = vmatpush1.msra.mxu0 0.0
  %495 = vmatprep.subr.mxu0 0.0
  %496 = vmatpush1.msra.mxu0 0.0
  %497 = vmatprep.subr.mxu0 0.0
  %498 = vmatpush1.msra.mxu0 0.0
  %499 = vmatprep.mubr.f32.mxu0 0.0
  %500 = vmatmul.mubr.f32.gmra.mrb[0].mxu0 %v433
  %v501 = vpop.f32.mrb[0].mxu0
  %v502 = vadd.f32 %v142, %v501
  %v503 = vpop.f32.mrb[0].mxu0
  %504 = vdwg.mxu0
  %v505 = vmax.f32 %v502, 0.0
  %506 = vmatprep.subr.mxu0 0.0
  %507 = vmatpush1.msra.mxu0 %v38
  %508 = vmatprep.subr.mxu0 0.0
  %509 = vmatpush1.msra.mxu0 %v39
  %510 = vmatprep.subr.mxu0 0.0
  %511 = vmatpush1.msra.mxu0 %v40
  %512 = vmatprep.subr.mxu0 0.0
  %513 = vmatpush1.msra.mxu0 %v41
  %514 = vmatprep.subr.mxu0 0.0
  %515 = vmatpush1.msra.mxu0 %v42
  %516 = vmatprep.subr.mxu0 0.0
  %517 = vmatpush1.msra.mxu0 %v43
  %518 = vmatprep.subr.mxu0 0.0
  %519 = vmatpush1.msra.mxu0 %v44
  %520 = vmatprep.subr.mxu0 0.0
  %521 = vmatpush1.msra.mxu0 %v45
  %522 = vmatprep.subr.mxu0 0.0
  %523 = vmatpush1.msra.mxu0 %v46
  %524 = vmatprep.subr.mxu0 0.0
  %525 = vmatpush1.msra.mxu0 %v47
  %526 = vmatprep.subr.mxu0 0.0
  %527 = vmatpush1.msra.mxu0 %v48
  %528 = vmatprep.subr.mxu0 0.0
  %529 = vmatpush1.msra.mxu0 %v49
  %530 = vmatprep.subr.mxu0 0.0
  %531 = vmatpush1.msra.mxu0 %v50
  %532 = vmatprep.subr.mxu0 0.0
  %533 = vmatpush1.msra.mxu0 %v51
  %534 = vmatprep.subr.mxu0 0.0
  %535 = vmatpush1.msra.mxu0 %v52
  %536 = vmatprep.subr.mxu0 0.0
  %537 = vmatpush1.msra.mxu0 %v53
  %538 = vmatprep.subr.mxu0 0.0
  %539 = vmatpush1.msra.mxu0 0.0
  %540 = vmatprep.subr.mxu0 0.0
  %541 = vmatpush1.msra.mxu0 0.0
  %542 = vmatprep.subr.mxu0 0.0
  %543 = vmatpush1.msra.mxu0 0.0
  %544 = vmatprep.subr.mxu0 0.0
  %545 = vmatpush1.msra.mxu0 0.0
  %546 = vmatprep.subr.mxu0 0.0
  %547 = vmatpush1.msra.mxu0 0.0
  %548 = vmatprep.subr.mxu0 0.0
  %549 = vmatpush1.msra.mxu0 0.0
  %550 = vmatprep.subr.mxu0 0.0
  %551 = vmatpush1.msra.mxu0 0.0
  %552 = vmatprep.subr.mxu0 0.0
  %553 = vmatpush1.msra.mxu0 0.0
  %554 = vmatprep.subr.mxu0 0.0
  %555 = vmatpush1.msra.mxu0 0.0
  %556 = vmatprep.subr.mxu0 0.0
  %557 = vmatpush1.msra.mxu0 0.0
  %558 = vmatprep.subr.mxu0 0.0
  %559 = vmatpush1.msra.mxu0 0.0
  %560 = vmatprep.subr.mxu0 0.0
  %561 = vmatpush1.msra.mxu0 0.0
  %562 = vmatprep.subr.mxu0 0.0
  %563 = vmatpush1.msra.mxu0 0.0
  %564 = vmatprep.subr.mxu0 0.0
  %565 = vmatpush1.msra.mxu0 0.0
  %566 = vmatprep.subr.mxu0 0.0
  %567 = vmatpush1.msra.mxu0 0.0
  %568 = vmatprep.subr.mxu0 0.0
  %569 = vmatpush1.msra.mxu0 0.0
  %570 = vmatprep.mubr.f32.mxu0 0.0
  %571 = vmatmul.mubr.f32.gmra.mrb[0].mxu0 %v505
  %v572 = vpop.f32.mrb[0].mxu0
  %v573 = vadd.f32 %v243, %v572
  %v574 = vpop.f32.mrb[0].mxu0
  %575 = vdwg.mxu0
  %v576 = vmax.f32 %v573, 0.0
  %v577 = vmul.f32 %v576, %v320
  %578 = vadd.xlane.f32.xlu0 %v577
  %v579 = vpop.xlane.xlu0 %578
  %v580 = vadd.f32 %v579, %v329
  %582 = vset.pattern.permute.xlu0 0
  %583 = vperm.xlu0 %582, %v580
  %v584 = vpop.permute.xlu0 %583
  %586 = vst [vmem:[%s9] sm:$0xff] %v584
  // Predicated region
  $region34: #{bert_ranker_forward.1} parent=0 // pred_check
    _
  $region35: #{bert_ranker_forward.1} parent=0 // pred_check_branch
    %588 = sbr.rel (0) target = $region37
  $region36: #{bert_ranker_forward.1} parent=0 // pred_region
    _
  $region37: #{bert_ranker_forward.1} parent=0 // pred_fallthru
    _
  // Predicated region
  $region38: #{bert_ranker_forward.1} parent=0 // pred_check
    _
  $region39: #{bert_ranker_forward.1} parent=0 // pred_check_branch
    %590 = sbr.rel (0) target = $region41
  $region40: #{bert_ranker_forward.1} parent=0 // pred_region
    _
  $region41: #{bert_ranker_forward.1} parent=0 // pred_fallthru
    _
  // Predicated region
  $region42: #{bert_ranker_forward.1} parent=0 // pred_check
    _
  $region43: #{bert_ranker_forward.1} parent=0 // pred_check_branch
    %592 = sbr.rel (0) target = $region45
  $region44: #{bert_ranker_forward.1} parent=0 // pred_region
    _
  $region45: #{bert_ranker_forward.1} parent=0 // pred_fallthru
    _
  // Predicated region
  $region46: #{bert_ranker_forward.1} parent=0 // pred_check
    _
  $region47: #{bert_ranker_forward.1} parent=0 // pred_check_branch
    %594 = sbr.rel (0) target = $region49
  $region48: #{bert_ranker_forward.1} parent=0 // pred_region
    _
  $region49: #{bert_ranker_forward.1} parent=0 // pred_fallthru
    _

</llo_original>
